<compile_context>
chip_gen: v5e
topology: v5e:2x2
jax: 0.10.0
libtpu: 0.0.40
codegen_flags: <defaults>
</compile_context>

<pallas_src>
import functools

import jax
import jax.numpy as jnp
from jax.experimental import pallas as pl
from jax.experimental.pallas import tpu as pltpu

LANES = 128
SUBLANES = 8
ACC_ROWS = 64                        # 8 independent (8,128) accumulator rows
TILE_R_MAX = 8192                    # 8192 x 128 f32 = 4 MiB per input block
VMEM_LIMIT_BYTES = 32 * 1024 * 1024  # 2 inputs x 2 bufs x 4 MiB = 16 MiB live
SMALL_N = SUBLANES * LANES           # below one vreg of work: plain jnp wins


def _rmse_kernel(x_ref, y_ref, o_ref, *, total_rows, tile_r, acc_rows,
                 last_is_ragged):
    i = pl.program_id(0)

    @pl.when(i == 0)
    def _init():
        o_ref[...] = jnp.zeros_like(o_ref)

    # Native-dtype DMA through the BlockSpec; cast to f32 on the VPU.
    d = x_ref[...].astype(jnp.float32) - y_ref[...].astype(jnp.float32)
    sq = d * d

    def _accumulate(vals):
        # (tile_r,128) -> (tile_r/acc_rows, acc_rows, 128): tile-aligned reshape
        # + sublane-aligned VPU adds into acc_rows independent accumulator rows
        # (ILP). Cross-lane reduce / mean / sqrt deferred to the wrapper.
        o_ref[...] += jnp.sum(
            vals.reshape(tile_r // acc_rows, acc_rows, LANES), axis=0)

    if last_is_ragged:
        last = pl.num_programs(0) - 1

        @pl.when(i != last)
        def _steady():
            _accumulate(sq)

        @pl.when(i == last)
        def _ragged():
            # Only the final tile pays the iota/compare/select. Rows past the
            # end of the input (boundary-DMA garbage) are select-ed to 0 AFTER
            # the square — keep this ordering (NaN-safe).
            row0 = i * tile_r
            row_ids = (jax.lax.broadcasted_iota(jnp.int32, (tile_r, LANES), 0)
                       + row0)
            _accumulate(jnp.where(row_ids < total_rows, sq, 0.0))
    else:
        _accumulate(sq)


def rmse(x, y):
    """sqrt(mean((x - y)**2)) over all elements (== torch.sqrt(MSELoss(x, y)))."""
    assert x.shape == y.shape, "MSELoss requires matching shapes"
    n = x.size

    # Tiny-input fast path: launch overhead dominates below one vreg of work.
    if n < SMALL_N:
        d = x.astype(jnp.float32) - y.astype(jnp.float32)
        return jnp.sqrt(jnp.mean(d * d))

    # Flatten to a lane-dense 2D slab. ravel/reshape of a contiguous array is
    # free; pad only in the rare non-lane-aligned case (padded diffs are 0 and
    # the denominator uses the original n).
    xf = jnp.ravel(x)
    yf = jnp.ravel(y)
    rem = n % LANES
    if rem:
        xf = jnp.pad(xf, (0, LANES - rem))
        yf = jnp.pad(yf, (0, LANES - rem))
    rows_total = xf.size // LANES
    x2 = xf.reshape(rows_total, LANES)
    y2 = yf.reshape(rows_total, LANES)

    # Largest 8-aligned tile that never exceeds the array's row count; only the
    # last tile can be ragged (masked in-kernel), no HBM row padding.
    tile_r = min(TILE_R_MAX, (rows_total // SUBLANES) * SUBLANES)
    acc_rows = ACC_ROWS if tile_r % ACC_ROWS == 0 else SUBLANES
    total_tiles = pl.cdiv(rows_total, tile_r)
    last_is_ragged = (rows_total % tile_r) != 0

    kernel = functools.partial(
        _rmse_kernel,
        total_rows=rows_total,
        tile_r=tile_r,
        acc_rows=acc_rows,
        last_is_ragged=last_is_ragged,
    )

    bytes_accessed = (n * (x.dtype.itemsize + y.dtype.itemsize)
                      + acc_rows * LANES * 4)

    partials = pl.pallas_call(
        kernel,
        out_shape=jax.ShapeDtypeStruct((acc_rows, LANES), jnp.float32),
        grid=(total_tiles,),
        in_specs=[
            pl.BlockSpec((tile_r, LANES), lambda i: (i, 0)),
            pl.BlockSpec((tile_r, LANES), lambda i: (i, 0)),
        ],
        out_specs=pl.BlockSpec((acc_rows, LANES), lambda i: (0, 0)),
        compiler_params=pltpu.CompilerParams(
            dimension_semantics=("arbitrary",),
            vmem_limit_bytes=VMEM_LIMIT_BYTES),
        cost_estimate=pl.CostEstimate(
            flops=3 * n, transcendentals=0, bytes_accessed=bytes_accessed),
    )(x2, y2)

    # Tiny epilogue on (acc_rows, 128) partials: final reduce, mean, sqrt.
    return jnp.sqrt(jnp.sum(partials) / jnp.float32(n))


if __name__ == "__main__":
    key = jax.random.PRNGKey(0)
    kx, ky = jax.random.split(key)
    # Small NCHW image pair, consistent with the PyTorch module's usage.
    x = jax.random.normal(kx, (2, 4, 16, 16), dtype=jnp.float32)
    y = jax.random.normal(ky, (2, 4, 16, 16), dtype=jnp.float32)

    result = jax.block_until_ready(rmse(x, y))

    # Reference: plain JAX == torch.sqrt(MSELoss(x, y)).
    ref = jnp.sqrt(jnp.mean((x - y) ** 2))
    assert jnp.allclose(result, ref, rtol=1e-5, atol=1e-6), (result, ref)

    print("KERNEL_OK")
</pallas_src>

<mosaic_0001>
module attributes {stable_mosaic.version = 11 : i64} {
  func.func @_rmse_kernel(%arg0: i32, %arg1: memref<16x128xf32, #tpu.memory_space<vmem>>, %arg2: memref<16x128xf32, #tpu.memory_space<vmem>>, %arg3: memref<8x128xf32, #tpu.memory_space<vmem>>) attributes {dimension_semantics = [#tpu.dimension_semantics<arbitrary>], iteration_bounds = array<i64: 1>, scalar_prefetch = 0 : i64, scratch_operands = 0 : i64, tpu.core_type = #tpu.core_type<tc>, window_params = [{transform_indices = @transform_0, window_bounds = array<i64: 16, 128>}, {transform_indices = @transform_1, window_bounds = array<i64: 16, 128>}, {pipeline_mode = #tpu.pipeline_mode<synchronous>, transform_indices = @transform_2, window_bounds = array<i64: 8, 128>}]} {
    %c0_i32 = arith.constant 0 : i32
    %0 = arith.cmpi eq, %arg0, %c0_i32 : i32
    %1 = arith.extui %0 : i1 to i32
    %c0_i32_0 = arith.constant 0 : i32
    %2 = arith.cmpi ne, %1, %c0_i32_0 : i32
    scf.if %2 {
      %cst_8 = arith.constant 0.000000e+00 : f32
      %12 = vector.broadcast %cst_8 : f32 to vector<8x128xf32>
      %c0_9 = arith.constant 0 : index
      %c0_10 = arith.constant 0 : index
      %13 = vector.load %arg3[%c0_9, %c0_10] : memref<8x128xf32, #tpu.memory_space<vmem>>, vector<8x128xf32>
      tpu.vector_store %arg3[%c0_9, %c0_10], %12 {strides = array<i32>} : memref<8x128xf32, #tpu.memory_space<vmem>>, vector<8x128xf32>,
    } else {
    }
    %c0 = arith.constant 0 : index
    %c0_1 = arith.constant 0 : index
    %3 = vector.load %arg1[%c0, %c0_1] : memref<16x128xf32, #tpu.memory_space<vmem>>, vector<16x128xf32>
    %c0_2 = arith.constant 0 : index
    %c0_3 = arith.constant 0 : index
    %4 = vector.load %arg2[%c0_2, %c0_3] : memref<16x128xf32, #tpu.memory_space<vmem>>, vector<16x128xf32>
    %5 = arith.subf %3, %4 : vector<16x128xf32>
    %6 = arith.mulf %5, %5 : vector<16x128xf32>
    %c0_4 = arith.constant 0 : index
    %c0_5 = arith.constant 0 : index
    %7 = vector.load %arg3[%c0_4, %c0_5] : memref<8x128xf32, #tpu.memory_space<vmem>>, vector<8x128xf32>
    %8 = vector.shape_cast %6 : vector<16x128xf32> to vector<2x8x128xf32>
    %cst = arith.constant dense<0.000000e+00> : vector<8x128xf32>
    %9 = vector.multi_reduction <add>, %8, %cst [0] : vector<2x8x128xf32> to vector<8x128xf32>
    %10 = arith.addf %7, %9 : vector<8x128xf32>
    %c0_6 = arith.constant 0 : index
    %c0_7 = arith.constant 0 : index
    %11 = vector.load %arg3[%c0_6, %c0_7] : memref<8x128xf32, #tpu.memory_space<vmem>>, vector<8x128xf32>
    tpu.vector_store %arg3[%c0_6, %c0_7], %10 {strides = array<i32>} : memref<8x128xf32, #tpu.memory_space<vmem>>, vector<8x128xf32>,
    return
  }
  func.func @transform_0(%arg0: i32) -> (i32, i32) {
    %c0_i32 = arith.constant 0 : i32
    %c0_i32_0 = arith.constant 0 : i32
    return %arg0, %c0_i32 : i32, i32
  }
  func.func @transform_1(%arg0: i32) -> (i32, i32) {
    %c0_i32 = arith.constant 0 : i32
    %c0_i32_0 = arith.constant 0 : i32
    return %arg0, %c0_i32 : i32, i32
  }
  func.func @transform_2(%arg0: i32) -> (i32, i32) {
    %c0_i32 = arith.constant 0 : i32
    %c0_i32_0 = arith.constant 0 : i32
    %c0_i32_1 = arith.constant 0 : i32
    return %c0_i32, %c0_i32_0 : i32, i32
  }
}

</mosaic_0001>

<llo_original>
// kernel: tpu_custom_call.1
$region0: #{tpu_custom_call.1}
  #allocation0 [shape = 'u32[]', space=smem, size = 0x4, offset = 0x4, fixed_abs, tag = 'smem constant byte address 0x4 - core index']
  #allocation1 [shape = 'u32[72,128]{1,0:T(1,128)}', space=vmem, size = 0x9000, scoped, tag = 'internal scratch']
  %s0 = inlined_call_operand.hbm [shape: f32[16,128], index: 0, kind: input, shape index: {}]
  %s1 = inlined_call_operand.hbm [shape: f32[16,128], index: 1, kind: input, shape index: {}]
  %s2 = inlined_call_operand.hbm [shape: f32[8,128], index: 2, kind: output, shape index: {}]
  %s3 = sld [smem:[#allocation0]]
  $region30: #{tpu_custom_call.1} parent=0
    _
  %s5 = ssub.s32 1, %s3
  %s6 = scalar_select 0, %s5, %s3
  $region1: #{tpu_custom_call.1} parent=0
    #allocation2 [shape = 'u8[8192]{0}', space=vmem, size = 0x2000, scoped, tag = 'input window, operand 0, single buffered']
    #allocation3 [shape = 's32[1]{0}', space=sflag, size = 0x4, scoped, tag = 'scoped memory for tpu_custom_call.1']
    #allocation4 [shape = 's32[1]{0}', space=sflag, size = 0x4, scoped, tag = 'scoped memory for tpu_custom_call.1']
    #allocation5 [shape = 'u8[8192]{0}', space=vmem, size = 0x2000, scoped, tag = 'input window, operand 1, single buffered']
    #allocation6 [shape = 's32[1]{0}', space=sflag, size = 0x4, scoped, tag = 'scoped memory for tpu_custom_call.1']
    #allocation7 [shape = 'u8[4096]{0}', space=vmem, size = 0x1000, scoped, tag = 'output window, operand 0, single buffered']
    %7 = vsyncpa [#allocation3], 0
    %8 = vsyncpa [#allocation6], 0
    %9 = vsyncpa [#allocation4], 0
    // Predicated region
    $region2: #{tpu_custom_call.1} parent=1 // pred_check
      _
    $region3: #{tpu_custom_call.1} parent=1 // pred_check_branch
      %11 = sbr.rel (0) target = $region5
    $region4: #{tpu_custom_call.1} parent=1 // pred_region
      %13 = vsyncadd [#allocation3], 0
      %s14 = sshll.u32 %s0, 4
      %s15 = int_to_ptr.hbm [resolvable:$true] %s14
      %s16 = sshll.u32 [#allocation2], 4
      %s17 = int_to_ptr.vmem [resolvable:$true] %s16
      %22 = dma.hbm_to_vmem [thread:$0]  %s15, 256, %s17, [#allocation3], 128, 128, 8
    $region5: #{tpu_custom_call.1} parent=1 // pred_fallthru
      _
    // Predicated region
    $region6: #{tpu_custom_call.1} parent=1 // pred_check
      _
    $region7: #{tpu_custom_call.1} parent=1 // pred_check_branch
      %24 = sbr.rel (0) target = $region9
    $region8: #{tpu_custom_call.1} parent=1 // pred_region
      %26 = vsyncadd [#allocation6], 0
      %s27 = sshll.u32 %s1, 4
      %s28 = int_to_ptr.hbm [resolvable:$true] %s27
      %s29 = sshll.u32 [#allocation5], 4
      %s30 = int_to_ptr.vmem [resolvable:$true] %s29
      %35 = dma.hbm_to_vmem [thread:$0]  %s28, 256, %s30, [#allocation6], 128, 128, 8
    $region9: #{tpu_custom_call.1} parent=1 // pred_fallthru
      _
    // Predicated region
    $region10: #{tpu_custom_call.1} parent=1 // pred_check
      _
    $region11: #{tpu_custom_call.1} parent=1 // pred_check_branch
      %37 = sbr.rel (0) target = $region13
    $region12: #{tpu_custom_call.1} parent=1 // pred_region
      %39 = dma.done [#allocation3], 256
    $region13: #{tpu_custom_call.1} parent=1 // pred_fallthru
      _
    // Predicated region
    $region14: #{tpu_custom_call.1} parent=1 // pred_check
      _
    $region15: #{tpu_custom_call.1} parent=1 // pred_check_branch
      %41 = sbr.rel (0) target = $region17
    $region16: #{tpu_custom_call.1} parent=1 // pred_region
      %43 = dma.done [#allocation6], 256
    $region17: #{tpu_custom_call.1} parent=1 // pred_fallthru
      _
    %p44 = scmp.eq.s32.totalorder 0, 0
    // Predicated region
    $region18: #{tpu_custom_call.1} parent=1 // pred_check
      %p45 = pneg %p44
    $region19: #{tpu_custom_call.1} parent=1 // pred_check_branch
      %47 = sbr.rel (%p45) target = $region21
    $region20: #{tpu_custom_call.1} parent=1 // pred_region
      %48 = vst [vmem:[#allocation7] sm:$0xff] 0.0
    $region21: #{tpu_custom_call.1} parent=1 // pred_fallthru
      _
    %v49 = vld [vmem:[#allocation2] sm:$0xff]
    %v50 = vld [vmem:[#allocation2 + $0x8] sm:$0xff]
    %v51 = vld [vmem:[#allocation5] sm:$0xff]
    %v52 = vld [vmem:[#allocation5 + $0x8] sm:$0xff]
    %v53 = vsub.f32 %v49, %v51
    %v54 = vsub.f32 %v50, %v52
    %v55 = vmul.f32 %v53, %v53
    %v56 = vmul.f32 %v54, %v54
    %v57 = vld [vmem:[#allocation7] sm:$0xff]
    %v58 = vadd.f32 %v55, %v56
    %v59 = vadd.f32 %v57, %v58
    %60 = vst [vmem:[#allocation7] sm:$0xff] %v59
    // Predicated region
    $region22: #{tpu_custom_call.1} parent=1 // pred_check
      _
    $region23: #{tpu_custom_call.1} parent=1 // pred_check_branch
      %62 = sbr.rel (0) target = $region25
    $region24: #{tpu_custom_call.1} parent=1 // pred_region
      %64 = vsyncadd [#allocation4], 0
      %s66 = sshll.u32 [#allocation7], 4
      %s67 = int_to_ptr.vmem [resolvable:$true] %s66
      %s68 = sshll.u32 %s2, 4
      %s69 = int_to_ptr.hbm [resolvable:$true] %s68
      %71 = dma.vmem_to_hbm [thread:$0]  %s67, 128, %s69, [#allocation4]
    $region25: #{tpu_custom_call.1} parent=1 // pred_fallthru
      _
    // Predicated region
    $region26: #{tpu_custom_call.1} parent=1 // pred_check
      _
    $region27: #{tpu_custom_call.1} parent=1 // pred_check_branch
      %73 = sbr.rel (0) target = $region29
    $region28: #{tpu_custom_call.1} parent=1 // pred_region
      %75 = dma.done [#allocation4], 128
    $region29: #{tpu_custom_call.1} parent=1 // pred_fallthru
      _
    %76 = vsyncpa [#allocation3], 1
    %77 = vsyncpa [#allocation6], 1
    %78 = vsyncpa [#allocation4], 1

</llo_original>
